<compile_context>
chip_gen: v6e
topology: v6e:2x2x1
jax: 0.10.0
libtpu: 0.0.40
codegen_flags: <defaults>
</compile_context>

<pallas_src>
import math

import jax
import jax.numpy as jnp
from jax.experimental import pallas as pl
from jax.experimental.pallas import tpu as pltpu


# Below this size a single DMA step is cheapest (per-grid-step overhead
# ~0.35 us would not be amortized by the chunk transfer time).
_MULTI_DMA_MIN_BYTES = 4 * 1024 * 1024
# One chunk per v7x TensorCore; v5e/v6e have a single TC, so 1 chunk there
# would be equivalent, but extra chunks are harmless (sequential DMA steps).
_MAX_DMA_CHUNKS = 2


def _dma_copy_kernel(x_hbm, o_hbm, sem):
    # Direct HBM->HBM copy of this grid step's chunk. No VMEM staging.
    i = pl.program_id(0)
    cp = pltpu.make_async_copy(x_hbm.at[i], o_hbm.at[i], sem)
    cp.start()
    cp.wait()


def _pick_num_chunks(total, itemsize):
    """Number of DMA chunks: 1 for small tensors, 2 (one per v7x TC) when large
    and evenly splittable."""
    if total * itemsize >= _MULTI_DMA_MIN_BYTES and total % _MAX_DMA_CHUNKS == 0:
        return _MAX_DMA_CHUNKS
    return 1


def _pallas_identity_copy(x, num_chunks=None):
    """Materialize x via direct HBM->HBM DMA (Pallas kernel, no VMEM staging)."""
    total = int(math.prod(x.shape)) if x.ndim > 0 else 1
    if total == 0:
        return x  # zero-sized: nothing to copy
    itemsize = jnp.dtype(x.dtype).itemsize

    if num_chunks is None:
        num_chunks = _pick_num_chunks(total, itemsize)
    if num_chunks < 1 or total % num_chunks != 0:
        num_chunks = 1
    chunk = total // num_chunks

    flat = x.reshape(num_chunks, chunk)
    out = pl.pallas_call(
        _dma_copy_kernel,
        out_shape=jax.ShapeDtypeStruct((num_chunks, chunk), x.dtype),
        grid_spec=pltpu.PrefetchScalarGridSpec(
            num_scalar_prefetch=0,
            grid=(num_chunks,),
            in_specs=[pl.BlockSpec(memory_space=pl.ANY)],
            out_specs=pl.BlockSpec(memory_space=pl.ANY),
            scratch_shapes=[pltpu.SemaphoreType.DMA(())],
        ),
        compiler_params=pltpu.CompilerParams(
            dimension_semantics=("parallel",),
        ),
        cost_estimate=pl.CostEstimate(
            flops=0,
            transcendentals=0,
            bytes_accessed=2 * total * itemsize,
        ),
    )(flat)
    return out.reshape(x.shape)


def squeeze_pallas(x, force_copy=False, num_chunks=None):
    """Equivalent of torch.Tensor.squeeze(): drop every dim of size 1.

    Default: zero-cost metadata reshape (optimal — no HBM traffic).
    force_copy=True: materialize the result via a direct HBM->HBM DMA kernel.
    """
    out_shape = tuple(int(d) for d in x.shape if int(d) != 1)
    total = int(math.prod(x.shape)) if x.ndim > 0 else 1
    if not force_copy or total == 0:
        return x.reshape(out_shape)
    return _pallas_identity_copy(x, num_chunks=num_chunks).reshape(out_shape)


if __name__ == "__main__":
    key = jax.random.PRNGKey(0)

    # Typical YOLO usage: tensor with singleton dims, e.g. (N, 1, H, W).
    x = jax.random.normal(key, (2, 1, 16, 16), dtype=jnp.float32)
    y_ref = jnp.squeeze(x)

    # Explicit Pallas DMA-copy path.
    y = jax.block_until_ready(squeeze_pallas(x, force_copy=True))
    assert y.shape == y_ref.shape == (2, 16, 16), (y.shape, y_ref.shape)
    assert y.dtype == x.dtype
    assert bool(jnp.array_equal(y, y_ref))

    # Default (recommended) path: free metadata reshape.
    y_fast = jax.block_until_ready(squeeze_pallas(x))
    assert y_fast.shape == (2, 16, 16)
    assert bool(jnp.array_equal(y_fast, y_ref))

    # No-singleton identity path through the DMA kernel.
    x2 = jax.random.normal(key, (2, 4, 16, 16), dtype=jnp.float32)
    y2 = jax.block_until_ready(squeeze_pallas(x2, force_copy=True))
    assert y2.shape == (2, 4, 16, 16)
    assert bool(jnp.array_equal(y2, x2))

    # bf16 input, explicitly split into 2 chunks to exercise the parallel-grid
    # (v7x dual-TensorCore) DMA path on a small tensor.
    x3 = jax.random.normal(key, (4, 1, 64, 128), dtype=jnp.bfloat16)
    y3 = jax.block_until_ready(squeeze_pallas(x3, force_copy=True, num_chunks=2))
    assert y3.shape == (4, 64, 128)
    assert bool(jnp.array_equal(y3, jnp.squeeze(x3)))

    # Ragged element count (105 elems, not a multiple of 128) — previously a
    # force_copy semantic hole; the direct DMA handles it natively.
    x4 = jax.random.normal(key, (3, 1, 5, 7), dtype=jnp.float32)
    y4 = jax.block_until_ready(squeeze_pallas(x4, force_copy=True))
    assert y4.shape == (3, 5, 7)
    assert bool(jnp.array_equal(y4, jnp.squeeze(x4)))

    # All-singleton -> scalar.
    x5 = jnp.ones((1, 1, 1, 1), dtype=jnp.float32) * 3.5
    y5 = jax.block_until_ready(squeeze_pallas(x5, force_copy=True))
    assert y5.shape == ()
    assert bool(jnp.array_equal(y5, jnp.float32(3.5)))

    print("KERNEL_OK")
</pallas_src>

<mosaic_0001>
module attributes {stable_mosaic.version = 11 : i64} {
  func.func @_dma_copy_kernel(%arg0: i32, %arg1: memref<1x512xf32, #tpu.memory_space<any>>, %arg2: memref<1x512xf32, #tpu.memory_space<any>>, %arg3: memref<!tpu.dma_semaphore, #tpu.memory_space<semaphore_mem>>) attributes {dimension_semantics = [#tpu.dimension_semantics<parallel>], iteration_bounds = array<i64: 1>, scalar_prefetch = 0 : i64, scratch_operands = 1 : i64, tpu.core_type = #tpu.core_type<tc>, window_params = [{}, {}]} {
    %c0_i32 = arith.constant 0 : i32
    %0 = tpu.memref_slice %arg1[%arg0, %c0_i32] : memref<1x512xf32, #tpu.memory_space<any>> -> memref<1x512xf32, #tpu.memory_space<any>>
    %1 = tpu.memref_squeeze %0 : memref<1x512xf32, #tpu.memory_space<any>> -> memref<512xf32, #tpu.memory_space<any>>
    %c0_i32_0 = arith.constant 0 : i32
    %2 = tpu.memref_slice %arg2[%arg0, %c0_i32_0] : memref<1x512xf32, #tpu.memory_space<any>> -> memref<1x512xf32, #tpu.memory_space<any>>
    %3 = tpu.memref_squeeze %2 : memref<1x512xf32, #tpu.memory_space<any>> -> memref<512xf32, #tpu.memory_space<any>>
    tpu.enqueue_dma source(%1 : memref<512xf32, #tpu.memory_space<any>>) target(%3 : memref<512xf32, #tpu.memory_space<any>>) target_semaphore(%arg3 : memref<!tpu.dma_semaphore, #tpu.memory_space<semaphore_mem>>)
    %c0_i32_1 = arith.constant 0 : i32
    %4 = tpu.memref_slice %arg1[%arg0, %c0_i32_1] : memref<1x512xf32, #tpu.memory_space<any>> -> memref<1x512xf32, #tpu.memory_space<any>>
    %5 = tpu.memref_squeeze %4 : memref<1x512xf32, #tpu.memory_space<any>> -> memref<512xf32, #tpu.memory_space<any>>
    %c0_i32_2 = arith.constant 0 : i32
    %6 = tpu.memref_slice %arg2[%arg0, %c0_i32_2] : memref<1x512xf32, #tpu.memory_space<any>> -> memref<1x512xf32, #tpu.memory_space<any>>
    %7 = tpu.memref_squeeze %6 : memref<1x512xf32, #tpu.memory_space<any>> -> memref<512xf32, #tpu.memory_space<any>>
    tpu.wait_dma2 semaphore(%arg3 : memref<!tpu.dma_semaphore, #tpu.memory_space<semaphore_mem>>) src(%5 : memref<512xf32, #tpu.memory_space<any>>) dst(%7 : memref<512xf32, #tpu.memory_space<any>>)
    return
  }
}

</mosaic_0001>

<llo_original>
// kernel: tpu_custom_call.1
$region0: #{tpu_custom_call.1}
  #allocation0 [shape = 'u32[]', space=smem, size = 0x4, offset = 0x4, fixed_abs, tag = 'smem constant byte address 0x4 - core index']
  #allocation1 [shape = 'u32[144,128]{1,0:T(1,128)}', space=vmem, size = 0x12000, scoped, tag = 'internal scratch']
  #allocation2 [shape = 's32[1]{0}', space=sflag, size = 0x4, scoped, tag = 'scratch operand']
  #allocation3 [shape = 's32[]', space=sflag, size = 0x4, offset = 0, fixed_abs, tag = 'sflag constant byte address 0x0 - dummy sync flag']
  #allocation4 [shape = 'u32[0]{0}', space=smem, size = 0, offset = 0, fixed_abs, tag = 'smem constant byte address 0x0 - null']
  %s0 = inlined_call_operand.hbm [shape: f32[1,512], index: 0, kind: input, shape index: {}]
  %s1 = inlined_call_operand.hbm [shape: f32[1,512], index: 1, kind: output, shape index: {}]
  %s2 = sld [smem:[#allocation0]]
  $region2: #{tpu_custom_call.1} parent=0
    _
  %s4 = ssub.s32 1, %s2
  %s5 = scalar_select 0, %s4, %s2
  %s6 = smul.u32 0, 4
  %s7 = smul.addr %s6, 16
  %s8 = scalar_lea.hbm %s0, %s7
  %s9 = smul.addr %s6, 16
  %s10 = scalar_lea.hbm %s1, %s9
  %s12 = sshll.u32 1, 14
  %s13 = sxor.u32 4294967295, %s12
  %17 = dma.general %s8, 64, %s10, [#allocation2], 131072, [#allocation4], 0, 0
  %19 = dma.done [#allocation2], 64
  %20 = vsyncmov [#allocation2]
  %s21 = vpop.sfrf %20
  %p22 = scmp.eq.s32.totalorder %s21, 0
  %p23 = pneg %p22
  %25 = shalt.err (%p23)

</llo_original>
